<compile_context>
chip_gen: v6e
topology: v6e:2x2x1
jax: 0.10.0
libtpu: 0.0.40
codegen_flags: <defaults>
</compile_context>

<pallas_src>
import jax
import jax.numpy as jnp
from jax.experimental import pallas as pl
from jax.experimental.pallas import tpu as pltpu


def _round_up(x, m):
    return ((x + m - 1) // m) * m


def _nll_loss_kernel(pred_ref, tgt_ref, sum_ref, cnt_ref):
    """One grid step: accumulate sum(pred[r, tgt[r]]) and count of valid rows.

    Grid is (num_parts, tiles_per_part); axis 0 is 'parallel' (one output block
    per partition, megacore-safe), axis 1 is the sequential reduction axis over
    which the (8,128) output blocks stay resident as accumulators.
    """
    i = pl.program_id(1)

    @pl.when(i == 0)
    def _init():
        sum_ref[...] = jnp.zeros_like(sum_ref)
        cnt_ref[...] = jnp.zeros_like(cnt_ref)

    pred = pred_ref[...]                       # (tn, C), native dtype
    tgt = tgt_ref[...]                         # (tn, 1), int32
    tn, c = pred.shape

    # One-hot of the target column.  The lane iota only spans [0, C), so any
    # target outside that range (wrapper padding -1, ignore_index=-100, bogus
    # >= C) never matches -> contributes nothing to the sum or the count.
    col = jax.lax.broadcasted_iota(jnp.int32, (tn, c), 1)
    hit = col == tgt

    # Select in native dtype (bf16 stays bf16 -> half the vregs on v6e/v7x),
    # lane-reduce, then accumulate rows in f32.  Exact: <= 1 non-zero per row.
    picked = jnp.where(hit, pred, jnp.zeros_like(pred))
    row_sum = jnp.sum(picked, axis=1, keepdims=True).astype(jnp.float32)  # (tn,1)
    part_sum = jnp.sum(row_sum, axis=0, keepdims=True)                    # (1,1)

    # Valid-row count from the narrow (tn, 1) target column (cheap vs (tn, C)).
    valid = ((tgt >= 0) & (tgt < c)).astype(jnp.float32)                  # (tn,1)
    part_cnt = jnp.sum(valid, axis=0, keepdims=True)                      # (1,1)

    sum_ref[...] = sum_ref[...] + part_sum     # broadcast (1,1) -> (8,128)
    cnt_ref[...] = cnt_ref[...] + part_cnt


def get_loss(pred, target, trans_feat=None, *, tile_n=16384,
             max_block_bytes=4 * 1024 * 1024, num_parts=2):
    """Mean NLL loss: mean_i(-pred[i, target[i]]) == F.nll_loss(pred, target).

    pred: (N, C) log-probabilities (f32/bf16; kept in native dtype in-kernel).
    target: (N,) integer class indices; anything outside [0, C) (including
            PyTorch's default ignore_index=-100) is dropped from numerator
            and denominator.
    trans_feat: accepted and ignored, as in the PyTorch module.
    """
    del trans_feat  # unused, matches the PyTorch module
    n, c = pred.shape
    itemsize = jnp.dtype(pred.dtype).itemsize

    # Row tile: as large as possible while keeping one step's VMEM (pred block
    # + lane-padded (tn,1) int32 target block ~ c*itemsize + 512 bytes/row)
    # around 4 MB, so double-buffering stays well inside even v5e's 16 MiB
    # scoped-VMEM default while amortizing per-grid-step overhead.
    bytes_per_row = c * itemsize + 512
    rows_by_bytes = max(16, max_block_bytes // bytes_per_row)
    tn = min(tile_n, rows_by_bytes, _round_up(n, 16))
    tn = max(16, (tn // 16) * 16)              # sublane-safe for f32 and bf16

    num_tiles = -(-n // tn)
    num_parts = num_parts if num_tiles >= 2 else 1   # 2 TCs on v7x; serial elsewhere
    tiles_per_part = -(-num_tiles // num_parts)
    padded_rows = num_parts * tiles_per_part * tn

    # Pad targets with -1 so padded / replayed rows never hit and never count.
    # pred itself is never padded: fully out-of-range pred block indices are
    # clamped in the index_map, and those rows carry -1 targets anyway.
    tgt2 = target.astype(jnp.int32).reshape(n, 1)
    if padded_rows > n:
        tgt2 = jnp.pad(tgt2, ((0, padded_rows - n), (0, 0)), constant_values=-1)

    pred_idx = lambda p, i: (jnp.minimum(p * tiles_per_part + i, num_tiles - 1), 0)
    tgt_idx = lambda p, i: (p * tiles_per_part + i, 0)
    out_idx = lambda p, i: (p, 0)

    sums, cnts = pl.pallas_call(
        _nll_loss_kernel,
        out_shape=(jax.ShapeDtypeStruct((num_parts * 8, 128), jnp.float32),
                   jax.ShapeDtypeStruct((num_parts * 8, 128), jnp.float32)),
        grid_spec=pltpu.PrefetchScalarGridSpec(
            num_scalar_prefetch=0,
            grid=(num_parts, tiles_per_part),
            in_specs=[
                pl.BlockSpec((tn, c), pred_idx),
                pl.BlockSpec((tn, 1), tgt_idx),
            ],
            out_specs=[
                pl.BlockSpec((8, 128), out_idx),
                pl.BlockSpec((8, 128), out_idx),
            ],
        ),
        compiler_params=pltpu.CompilerParams(
            dimension_semantics=("parallel", "arbitrary")),
    )(pred, tgt2)

    # Each partition's (8,128) block holds its partial replicated; pick one
    # element per block and combine.
    total_sum = jnp.sum(sums[::8, 0])
    total_cnt = jnp.sum(cnts[::8, 0])
    return -total_sum / total_cnt


if __name__ == "__main__":
    key = jax.random.PRNGKey(0)
    k1, k2, k3, k4, k5 = jax.random.split(key, 5)

    # Case 1: f32 log-probs, single tile (128 points, 16 part classes).
    N1, C1 = 128, 16
    logits1 = jax.random.normal(k1, (N1, C1), dtype=jnp.float32)
    pred1 = jax.nn.log_softmax(logits1, axis=-1)
    target1 = jax.random.randint(k2, (N1,), 0, C1, dtype=jnp.int32)
    trans_feat = jax.random.normal(k3, (N1, 64), dtype=jnp.float32)  # unused

    loss1 = jax.block_until_ready(get_loss(pred1, target1, trans_feat))
    ref1 = -jnp.mean(pred1[jnp.arange(N1), target1])
    assert jnp.allclose(loss1, ref1, atol=1e-5, rtol=1e-5), (loss1, ref1)

    # Case 2: bf16 log-probs, multi-tile grid (3 row tiles -> 2 partitions,
    #         exercises target padding and pred block-index clamping), odd C,
    #         plus some ignore_index=-100 labels.
    N2, C2 = 96, 13
    logits2 = jax.random.normal(k4, (N2, C2), dtype=jnp.float32)
    pred2 = jax.nn.log_softmax(logits2, axis=-1).astype(jnp.bfloat16)
    target2 = jax.random.randint(k5, (N2,), 0, C2, dtype=jnp.int32)
    target2 = target2.at[::7].set(-100)  # ignored rows

    loss2 = jax.block_until_ready(get_loss(pred2, target2, None, tile_n=32))
    p2 = pred2.astype(jnp.float32)
    valid2 = target2 >= 0
    gathered = p2[jnp.arange(N2), jnp.clip(target2, 0, C2 - 1)]
    ref2 = -(jnp.sum(jnp.where(valid2, gathered, 0.0)) / jnp.sum(valid2))
    assert jnp.allclose(loss2, ref2, atol=1e-3, rtol=1e-3), (loss2, ref2)

    print("KERNEL_OK")
</pallas_src>

<mosaic_0001>
module attributes {stable_mosaic.version = 11 : i64} {
  func.func @_nll_loss_kernel(%arg0: i32, %arg1: i32, %arg2: memref<128x16xf32, #tpu.memory_space<vmem>>, %arg3: memref<128x1xi32, #tpu.memory_space<vmem>>, %arg4: memref<8x128xf32, #tpu.memory_space<vmem>>, %arg5: memref<8x128xf32, #tpu.memory_space<vmem>>) attributes {dimension_semantics = [#tpu.dimension_semantics<parallel>, #tpu.dimension_semantics<arbitrary>], iteration_bounds = array<i64: 1, 1>, scalar_prefetch = 0 : i64, scratch_operands = 0 : i64, tpu.core_type = #tpu.core_type<tc>, window_params = [{transform_indices = @transform_0, window_bounds = array<i64: 128, 16>}, {transform_indices = @transform_1, window_bounds = array<i64: 128, 1>}, {transform_indices = @transform_2, window_bounds = array<i64: 8, 128>}, {transform_indices = @transform_3, window_bounds = array<i64: 8, 128>}]} {
    %c0_i32 = arith.constant 0 : i32
    %0 = arith.cmpi eq, %arg1, %c0_i32 : i32
    %1 = arith.extui %0 : i1 to i32
    %c0_i32_0 = arith.constant 0 : i32
    %2 = arith.cmpi ne, %1, %c0_i32_0 : i32
    scf.if %2 {
      %cst_16 = arith.constant 0.000000e+00 : f32
      %31 = vector.broadcast %cst_16 : f32 to vector<8x128xf32>
      %c0_17 = arith.constant 0 : index
      %c0_18 = arith.constant 0 : index
      %32 = vector.load %arg4[%c0_17, %c0_18] : memref<8x128xf32, #tpu.memory_space<vmem>>, vector<8x128xf32>
      tpu.vector_store %arg4[%c0_17, %c0_18], %31 {strides = array<i32>} : memref<8x128xf32, #tpu.memory_space<vmem>>, vector<8x128xf32>,
      %cst_19 = arith.constant 0.000000e+00 : f32
      %33 = vector.broadcast %cst_19 : f32 to vector<8x128xf32>
      %c0_20 = arith.constant 0 : index
      %c0_21 = arith.constant 0 : index
      %34 = vector.load %arg5[%c0_20, %c0_21] : memref<8x128xf32, #tpu.memory_space<vmem>>, vector<8x128xf32>
      tpu.vector_store %arg5[%c0_20, %c0_21], %33 {strides = array<i32>} : memref<8x128xf32, #tpu.memory_space<vmem>>, vector<8x128xf32>,
    } else {
    }
    %c0 = arith.constant 0 : index
    %c0_1 = arith.constant 0 : index
    %3 = vector.load %arg2[%c0, %c0_1] : memref<128x16xf32, #tpu.memory_space<vmem>>, vector<128x16xf32>
    %c0_2 = arith.constant 0 : index
    %c0_3 = arith.constant 0 : index
    %4 = vector.load %arg3[%c0_2, %c0_3] : memref<128x1xi32, #tpu.memory_space<vmem>>, vector<128x1xi32>
    %5 = tpu.iota {dimensions = array<i32: 1>} : vector<128x16xi32>
    %6 = vector.broadcast %4 : vector<128x1xi32> to vector<128x16xi32>
    %7 = arith.cmpi eq, %5, %6 : vector<128x16xi32>
    %cst = arith.constant 0.000000e+00 : f32
    %8 = vector.broadcast %cst : f32 to vector<128x16xf32>
    %9 = arith.select %7, %3, %8 : vector<128x16xi1>, vector<128x16xf32>
    %cst_4 = arith.constant dense<0.000000e+00> : vector<128xf32>
    %10 = vector.multi_reduction <add>, %9, %cst_4 [1] : vector<128x16xf32> to vector<128xf32>
    %11 = vector.shape_cast %10 : vector<128xf32> to vector<128x1xf32>
    %cst_5 = arith.constant dense<0.000000e+00> : vector<1xf32>
    %12 = vector.multi_reduction <add>, %11, %cst_5 [0] : vector<128x1xf32> to vector<1xf32>
    %13 = vector.shape_cast %12 : vector<1xf32> to vector<1x1xf32>
    %c0_i32_6 = arith.constant 0 : i32
    %14 = vector.broadcast %c0_i32_6 : i32 to vector<128x1xi32>
    %15 = arith.cmpi sge, %4, %14 : vector<128x1xi32>
    %c16_i32 = arith.constant 16 : i32
    %16 = vector.broadcast %c16_i32 : i32 to vector<128x1xi32>
    %17 = arith.cmpi slt, %4, %16 : vector<128x1xi32>
    %18 = arith.andi %15, %17 : vector<128x1xi1>
    %19 = arith.extui %18 : vector<128x1xi1> to vector<128x1xi32>
    %20 = arith.sitofp %19 : vector<128x1xi32> to vector<128x1xf32>
    %cst_7 = arith.constant dense<0.000000e+00> : vector<1xf32>
    %21 = vector.multi_reduction <add>, %20, %cst_7 [0] : vector<128x1xf32> to vector<1xf32>
    %22 = vector.shape_cast %21 : vector<1xf32> to vector<1x1xf32>
    %c0_8 = arith.constant 0 : index
    %c0_9 = arith.constant 0 : index
    %23 = vector.load %arg4[%c0_8, %c0_9] : memref<8x128xf32, #tpu.memory_space<vmem>>, vector<8x128xf32>
    %24 = vector.broadcast %13 : vector<1x1xf32> to vector<8x128xf32>
    %25 = arith.addf %23, %24 : vector<8x128xf32>
    %c0_10 = arith.constant 0 : index
    %c0_11 = arith.constant 0 : index
    %26 = vector.load %arg4[%c0_10, %c0_11] : memref<8x128xf32, #tpu.memory_space<vmem>>, vector<8x128xf32>
    tpu.vector_store %arg4[%c0_10, %c0_11], %25 {strides = array<i32>} : memref<8x128xf32, #tpu.memory_space<vmem>>, vector<8x128xf32>,
    %c0_12 = arith.constant 0 : index
    %c0_13 = arith.constant 0 : index
    %27 = vector.load %arg5[%c0_12, %c0_13] : memref<8x128xf32, #tpu.memory_space<vmem>>, vector<8x128xf32>
    %28 = vector.broadcast %22 : vector<1x1xf32> to vector<8x128xf32>
    %29 = arith.addf %27, %28 : vector<8x128xf32>
    %c0_14 = arith.constant 0 : index
    %c0_15 = arith.constant 0 : index
    %30 = vector.load %arg5[%c0_14, %c0_15] : memref<8x128xf32, #tpu.memory_space<vmem>>, vector<8x128xf32>
    tpu.vector_store %arg5[%c0_14, %c0_15], %29 {strides = array<i32>} : memref<8x128xf32, #tpu.memory_space<vmem>>, vector<8x128xf32>,
    return
  }
  func.func @transform_0(%arg0: i32, %arg1: i32) -> (i32, i32) {
    %c1_i32 = arith.constant 1 : i32
    %0 = arith.muli %arg0, %c1_i32 : i32
    %1 = arith.addi %0, %arg1 : i32
    %c0_i32 = arith.constant 0 : i32
    %2 = arith.minsi %1, %c0_i32 : i32
    %c0_i32_0 = arith.constant 0 : i32
    %c0_i32_1 = arith.constant 0 : i32
    return %2, %c0_i32_0 : i32, i32
  }
  func.func @transform_1(%arg0: i32, %arg1: i32) -> (i32, i32) {
    %c1_i32 = arith.constant 1 : i32
    %0 = arith.muli %arg0, %c1_i32 : i32
    %1 = arith.addi %0, %arg1 : i32
    %c0_i32 = arith.constant 0 : i32
    %c0_i32_0 = arith.constant 0 : i32
    return %1, %c0_i32 : i32, i32
  }
  func.func @transform_2(%arg0: i32, %arg1: i32) -> (i32, i32) {
    %c0_i32 = arith.constant 0 : i32
    %c0_i32_0 = arith.constant 0 : i32
    return %arg0, %c0_i32 : i32, i32
  }
  func.func @transform_3(%arg0: i32, %arg1: i32) -> (i32, i32) {
    %c0_i32 = arith.constant 0 : i32
    %c0_i32_0 = arith.constant 0 : i32
    return %arg0, %c0_i32 : i32, i32
  }
}

</mosaic_0001>

<llo_original>
// kernel: tpu_custom_call.1
$region0: #{tpu_custom_call.1}
  #allocation0 [shape = 'u32[]', space=smem, size = 0x4, offset = 0x4, fixed_abs, tag = 'smem constant byte address 0x4 - core index']
  #allocation1 [shape = 'u32[144,128]{1,0:T(1,128)}', space=vmem, size = 0x12000, scoped, tag = 'internal scratch']
  %s0 = inlined_call_operand.vmem [shape: f32[128,16], index: 0, kind: input, shape index: {}]
  %s1 = inlined_call_operand.vmem [shape: s32[128,1], index: 1, kind: input, shape index: {}]
  %s2 = inlined_call_operand.hbm [shape: f32[8,128], index: 2, kind: output, shape index: {0}]
  %s3 = inlined_call_operand.hbm [shape: f32[8,128], index: 3, kind: output, shape index: {1}]
  %4 = xla_tuple %s2, %s3
  %s5 = sld [smem:[#allocation0]]
  $region30: #{tpu_custom_call.1} parent=0
    _
  %s7 = ssub.s32 1, %s5
  %s8 = scalar_select 0, %s7, %s5
  $region1: #{tpu_custom_call.1} parent=0
    #allocation2 [shape = 'u8[4096]{0}', space=vmem, size = 0x1000, scoped, tag = 'output window, operand 0, single buffered']
    #allocation3 [shape = 's32[1]{0}', space=sflag, size = 0x4, scoped, tag = 'scoped memory for tpu_custom_call.1']
    #allocation4 [shape = 'u8[4096]{0}', space=vmem, size = 0x1000, scoped, tag = 'output window, operand 1, single buffered']
    #allocation5 [shape = 's32[1]{0}', space=sflag, size = 0x4, scoped, tag = 'scoped memory for tpu_custom_call.1']
    %9 = vsyncpa [#allocation3], 0
    %10 = vsyncpa [#allocation5], 0
    // Predicated region
    $region2: #{tpu_custom_call.1} parent=1 // pred_check
      _
    $region3: #{tpu_custom_call.1} parent=1 // pred_check_branch
      %12 = sbr.rel (0) target = $region5
    $region4: #{tpu_custom_call.1} parent=1 // pred_region
      %s13 = sadd.s32 0, 0
      %p14 = scmp.lt.s32.totalorder %s13, 0
      %s15 = scalar_select %p14, %s13, 0
      %s16 = smul.u32 16, %s15
      %p17 = scmp.lt.s32.totalorder %s16, 15
      %s18 = scalar_select %p17, %s16, 15
      %s19 = smul.addr %s18, 8
      %s20 = scalar_lea.vmem %s0, %s19
      %s21 = sadd.s32 0, 0
      %p22 = scmp.lt.s32.totalorder %s21, 0
      %s23 = scalar_select %p22, %s21, 0
      %s24 = smul.u32 16, %s23
    $region5: #{tpu_custom_call.1} parent=1 // pred_fallthru
      _
    // Predicated region
    $region6: #{tpu_custom_call.1} parent=1 // pred_check
      _
    $region7: #{tpu_custom_call.1} parent=1 // pred_check_branch
      %26 = sbr.rel (0) target = $region9
    $region8: #{tpu_custom_call.1} parent=1 // pred_region
      %s27 = sadd.s32 0, 0
      %s28 = smul.u32 16, %s27
      %p29 = scmp.lt.s32.totalorder %s28, 15
      %s30 = scalar_select %p29, %s28, 15
      %s31 = smul.addr %s30, 8
      %s32 = scalar_lea.vmem %s1, %s31
      %s33 = sadd.s32 0, 0
      %s34 = smul.u32 16, %s33
    $region9: #{tpu_custom_call.1} parent=1 // pred_fallthru
      _
    %s35 = sadd.s32 0, 0
    %p36 = scmp.lt.s32.totalorder %s35, 0
    %s37 = scalar_select %p36, %s35, 0
    %s38 = smul.u32 16, %s37
    %p39 = scmp.lt.s32.totalorder %s38, 15
    %s40 = scalar_select %p39, %s38, 15
    %s41 = smul.addr %s40, 8
    %s42 = scalar_lea.vmem %s0, %s41
    %s43 = sadd.s32 0, 0
    %s44 = smul.u32 16, %s43
    %p45 = scmp.lt.s32.totalorder %s44, 15
    %s46 = scalar_select %p45, %s44, 15
    %s47 = smul.addr %s46, 8
    %s48 = scalar_lea.vmem %s1, %s47
    %s49 = sadd.s32 0, 0
    %p50 = scmp.lt.s32.totalorder %s49, 0
    %s51 = scalar_select %p50, %s49, 0
    %s52 = smul.u32 16, %s51
    %p53 = scmp.lt.s32.totalorder %s52, 15
    %s54 = scalar_select %p53, %s52, 15
    %s55 = smul.addr %s54, 8
    %s56 = scalar_lea.vmem %s0, %s55
    %s57 = sadd.s32 0, 0
    %p58 = scmp.lt.s32.totalorder %s57, 0
    %s59 = scalar_select %p58, %s57, 0
    %s60 = smul.u32 16, %s59
    %s61 = sadd.s32 0, 0
    %s62 = smul.u32 16, %s61
    %p63 = scmp.lt.s32.totalorder %s62, 15
    %s64 = scalar_select %p63, %s62, 15
    %s65 = smul.addr %s64, 8
    %s66 = scalar_lea.vmem %s1, %s65
    %s67 = sadd.s32 0, 0
    %s68 = smul.u32 16, %s67
    %p69 = scmp.eq.s32.totalorder 0, 0
    // Predicated region
    $region10: #{tpu_custom_call.1} parent=1 // pred_check
      %p70 = pneg %p69
    $region11: #{tpu_custom_call.1} parent=1 // pred_check_branch
      %72 = sbr.rel (%p70) target = $region13
    $region12: #{tpu_custom_call.1} parent=1 // pred_region
      %73 = vst [vmem:[#allocation2] sm:$0xff] 0.0
      %74 = vst [vmem:[#allocation4] sm:$0xff] 0.0
    $region13: #{tpu_custom_call.1} parent=1 // pred_fallthru
      _
    %v75 = vld [vmem:[%s56] sm:$0xff]
    %v76 = vld [vmem:[%s56 + $0x8] sm:$0xff]
    %v77 = vld [vmem:[%s56 + $0x10] sm:$0xff]
    %v78 = vld [vmem:[%s56 + $0x18] sm:$0xff]
    %v79 = vld [vmem:[%s56 + $0x20] sm:$0xff]
    %v80 = vld [vmem:[%s56 + $0x28] sm:$0xff]
    %v81 = vld [vmem:[%s56 + $0x30] sm:$0xff]
    %v82 = vld [vmem:[%s56 + $0x38] sm:$0xff]
    %v83 = vld [vmem:[%s56 + $0x40] sm:$0xff]
    %v84 = vld [vmem:[%s56 + $0x48] sm:$0xff]
    %v85 = vld [vmem:[%s56 + $0x50] sm:$0xff]
    %v86 = vld [vmem:[%s56 + $0x58] sm:$0xff]
    %v87 = vld [vmem:[%s56 + $0x60] sm:$0xff]
    %v88 = vld [vmem:[%s56 + $0x68] sm:$0xff]
    %v89 = vld [vmem:[%s56 + $0x70] sm:$0xff]
    %v90 = vld [vmem:[%s56 + $0x78] sm:$0xff]
    %v91 = vld [vmem:[%s66] sm:$0xff]
    %v92 = vld [vmem:[%s66 + $0x8] sm:$0xff]
    %v93 = vld [vmem:[%s66 + $0x10] sm:$0xff]
    %v94 = vld [vmem:[%s66 + $0x18] sm:$0xff]
    %v95 = vld [vmem:[%s66 + $0x20] sm:$0xff]
    %v96 = vld [vmem:[%s66 + $0x28] sm:$0xff]
    %v97 = vld [vmem:[%s66 + $0x30] sm:$0xff]
    %v98 = vld [vmem:[%s66 + $0x38] sm:$0xff]
    %v99 = vld [vmem:[%s66 + $0x40] sm:$0xff]
    %v100 = vld [vmem:[%s66 + $0x48] sm:$0xff]
    %v101 = vld [vmem:[%s66 + $0x50] sm:$0xff]
    %v102 = vld [vmem:[%s66 + $0x58] sm:$0xff]
    %v103 = vld [vmem:[%s66 + $0x60] sm:$0xff]
    %v104 = vld [vmem:[%s66 + $0x68] sm:$0xff]
    %v105 = vld [vmem:[%s66 + $0x70] sm:$0xff]
    %v106 = vld [vmem:[%s66 + $0x78] sm:$0xff]
    %v107 = vlaneseq
    %v108 = vand.u32 %v107, 127
    %109 = vset.pattern.permute.xlu0 0
    %110 = vperm.xlu0 %109, %v91
    %v111 = vpop.permute.xlu0 %110
    %112 = vset.pattern.permute.xlu0 0
    %113 = vperm.xlu0 %112, %v92
    %v114 = vpop.permute.xlu0 %113
    %115 = vset.pattern.permute.xlu0 0
    %116 = vperm.xlu0 %115, %v93
    %v117 = vpop.permute.xlu0 %116
    %118 = vset.pattern.permute.xlu0 0
    %119 = vperm.xlu0 %118, %v94
    %v120 = vpop.permute.xlu0 %119
    %121 = vset.pattern.permute.xlu0 0
    %122 = vperm.xlu0 %121, %v95
    %v123 = vpop.permute.xlu0 %122
    %124 = vset.pattern.permute.xlu0 0
    %125 = vperm.xlu0 %124, %v96
    %v126 = vpop.permute.xlu0 %125
    %127 = vset.pattern.permute.xlu0 0
    %128 = vperm.xlu0 %127, %v97
    %v129 = vpop.permute.xlu0 %128
    %130 = vset.pattern.permute.xlu0 0
    %131 = vperm.xlu0 %130, %v98
    %v132 = vpop.permute.xlu0 %131
    %133 = vset.pattern.permute.xlu0 0
    %134 = vperm.xlu0 %133, %v99
    %v135 = vpop.permute.xlu0 %134
    %136 = vset.pattern.permute.xlu0 0
    %137 = vperm.xlu0 %136, %v100
    %v138 = vpop.permute.xlu0 %137
    %139 = vset.pattern.permute.xlu0 0
    %140 = vperm.xlu0 %139, %v101
    %v141 = vpop.permute.xlu0 %140
    %142 = vset.pattern.permute.xlu0 0
    %143 = vperm.xlu0 %142, %v102
    %v144 = vpop.permute.xlu0 %143
    %145 = vset.pattern.permute.xlu0 0
    %146 = vperm.xlu0 %145, %v103
    %v147 = vpop.permute.xlu0 %146
    %148 = vset.pattern.permute.xlu0 0
    %149 = vperm.xlu0 %148, %v104
    %v150 = vpop.permute.xlu0 %149
    %151 = vset.pattern.permute.xlu0 0
    %152 = vperm.xlu0 %151, %v105
    %v153 = vpop.permute.xlu0 %152
    %154 = vset.pattern.permute.xlu0 0
    %155 = vperm.xlu0 %154, %v106
    %v156 = vpop.permute.xlu0 %155
    %vm157 = vcmp.eq.s32.totalorder %v108, %v111
    %vm158 = vcmp.eq.s32.totalorder %v108, %v114
    %vm159 = vcmp.eq.s32.totalorder %v108, %v117
    %vm160 = vcmp.eq.s32.totalorder %v108, %v120
    %vm161 = vcmp.eq.s32.totalorder %v108, %v123
    %vm162 = vcmp.eq.s32.totalorder %v108, %v126
    %vm163 = vcmp.eq.s32.totalorder %v108, %v129
    %vm164 = vcmp.eq.s32.totalorder %v108, %v132
    %vm165 = vcmp.eq.s32.totalorder %v108, %v135
    %vm166 = vcmp.eq.s32.totalorder %v108, %v138
    %vm167 = vcmp.eq.s32.totalorder %v108, %v141
    %vm168 = vcmp.eq.s32.totalorder %v108, %v144
    %vm169 = vcmp.eq.s32.totalorder %v108, %v147
    %vm170 = vcmp.eq.s32.totalorder %v108, %v150
    %vm171 = vcmp.eq.s32.totalorder %v108, %v153
    %vm172 = vcmp.eq.s32.totalorder %v108, %v156
    %v173 = vsel %vm157, %v75, 0.0
    %v174 = vsel %vm158, %v76, 0.0
    %v175 = vsel %vm159, %v77, 0.0
    %v176 = vsel %vm160, %v78, 0.0
    %v177 = vsel %vm161, %v79, 0.0
    %v178 = vsel %vm162, %v80, 0.0
    %v179 = vsel %vm163, %v81, 0.0
    %v180 = vsel %vm164, %v82, 0.0
    %v181 = vsel %vm165, %v83, 0.0
    %v182 = vsel %vm166, %v84, 0.0
    %v183 = vsel %vm167, %v85, 0.0
    %v184 = vsel %vm168, %v86, 0.0
    %v185 = vsel %vm169, %v87, 0.0
    %v186 = vsel %vm170, %v88, 0.0
    %v187 = vsel %vm171, %v89, 0.0
    %v188 = vsel %vm172, %v90, 0.0
    %vm189 = vcmask 130048
    %v190 = vsel %vm189, %v173, 0.0
    %191 = vadd.xlane.f32.xlu0 %v190
    %v192 = vpop.xlane.xlu0 %191
    %v193 = vsel %vm189, %v174, 0.0
    %194 = vadd.xlane.f32.xlu0 %v193
    %v195 = vpop.xlane.xlu0 %194
    %v196 = vsel %vm189, %v175, 0.0
    %197 = vadd.xlane.f32.xlu0 %v196
    %v198 = vpop.xlane.xlu0 %197
    %v199 = vsel %vm189, %v176, 0.0
    %200 = vadd.xlane.f32.xlu0 %v199
    %v201 = vpop.xlane.xlu0 %200
    %v202 = vsel %vm189, %v177, 0.0
    %203 = vadd.xlane.f32.xlu0 %v202
    %v204 = vpop.xlane.xlu0 %203
    %v205 = vsel %vm189, %v178, 0.0
    %206 = vadd.xlane.f32.xlu0 %v205
    %v207 = vpop.xlane.xlu0 %206
    %v208 = vsel %vm189, %v179, 0.0
    %209 = vadd.xlane.f32.xlu0 %v208
    %v210 = vpop.xlane.xlu0 %209
    %v211 = vsel %vm189, %v180, 0.0
    %212 = vadd.xlane.f32.xlu0 %v211
    %v213 = vpop.xlane.xlu0 %212
    %v214 = vsel %vm189, %v181, 0.0
    %215 = vadd.xlane.f32.xlu0 %v214
    %v216 = vpop.xlane.xlu0 %215
    %v217 = vsel %vm189, %v182, 0.0
    %218 = vadd.xlane.f32.xlu0 %v217
    %v219 = vpop.xlane.xlu0 %218
    %v220 = vsel %vm189, %v183, 0.0
    %221 = vadd.xlane.f32.xlu0 %v220
    %v222 = vpop.xlane.xlu0 %221
    %v223 = vsel %vm189, %v184, 0.0
    %224 = vadd.xlane.f32.xlu0 %v223
    %v225 = vpop.xlane.xlu0 %224
    %v226 = vsel %vm189, %v185, 0.0
    %227 = vadd.xlane.f32.xlu0 %v226
    %v228 = vpop.xlane.xlu0 %227
    %v229 = vsel %vm189, %v186, 0.0
    %230 = vadd.xlane.f32.xlu0 %v229
    %v231 = vpop.xlane.xlu0 %230
    %v232 = vsel %vm189, %v187, 0.0
    %233 = vadd.xlane.f32.xlu0 %v232
    %v234 = vpop.xlane.xlu0 %233
    %v235 = vsel %vm189, %v188, 0.0
    %236 = vadd.xlane.f32.xlu0 %v235
    %v237 = vpop.xlane.xlu0 %236
    %v238 = vadd.f32 %v192, %v195
    %v239 = vadd.f32 %v238, %v198
    %v240 = vadd.f32 %v239, %v201
    %v241 = vadd.f32 %v240, %v204
    %v242 = vadd.f32 %v241, %v207
    %v243 = vadd.f32 %v242, %v210
    %v244 = vadd.f32 %v243, %v213
    %v245 = vadd.f32 %v244, %v216
    %v246 = vadd.f32 %v245, %v219
    %v247 = vadd.f32 %v246, %v222
    %v248 = vadd.f32 %v247, %v225
    %v249 = vadd.f32 %v248, %v228
    %v250 = vadd.f32 %v249, %v231
    %v251 = vadd.f32 %v250, %v234
    %v252 = vadd.f32 %v251, %v237
    %v253 = vrot.slane %v252, 4
    %v254 = vadd.f32 %v252, %v253
    %v255 = vrot.slane %v254, 2
    %v256 = vadd.f32 %v254, %v255
    %v257 = vrot.slane %v256, 1
    %v258 = vadd.f32 %v256, %v257
    %vm259 = vcmp.ge.s32.totalorder %v91, 0
    %vm260 = vcmp.ge.s32.totalorder %v92, 0
    %vm261 = vcmp.ge.s32.totalorder %v93, 0
    %vm262 = vcmp.ge.s32.totalorder %v94, 0
    %vm263 = vcmp.ge.s32.totalorder %v95, 0
    %vm264 = vcmp.ge.s32.totalorder %v96, 0
    %vm265 = vcmp.ge.s32.totalorder %v97, 0
    %vm266 = vcmp.ge.s32.totalorder %v98, 0
    %vm267 = vcmp.ge.s32.totalorder %v99, 0
    %vm268 = vcmp.ge.s32.totalorder %v100, 0
    %vm269 = vcmp.ge.s32.totalorder %v101, 0
    %vm270 = vcmp.ge.s32.totalorder %v102, 0
    %vm271 = vcmp.ge.s32.totalorder %v103, 0
    %vm272 = vcmp.ge.s32.totalorder %v104, 0
    %vm273 = vcmp.ge.s32.totalorder %v105, 0
    %vm274 = vcmp.ge.s32.totalorder %v106, 0
    %vm275 = vcmp.lt.s32.totalorder %v91, 16
    %vm276 = vcmp.lt.s32.totalorder %v92, 16
    %vm277 = vcmp.lt.s32.totalorder %v93, 16
    %vm278 = vcmp.lt.s32.totalorder %v94, 16
    %vm279 = vcmp.lt.s32.totalorder %v95, 16
    %vm280 = vcmp.lt.s32.totalorder %v96, 16
    %vm281 = vcmp.lt.s32.totalorder %v97, 16
    %vm282 = vcmp.lt.s32.totalorder %v98, 16
    %vm283 = vcmp.lt.s32.totalorder %v99, 16
    %vm284 = vcmp.lt.s32.totalorder %v100, 16
    %vm285 = vcmp.lt.s32.totalorder %v101, 16
    %vm286 = vcmp.lt.s32.totalorder %v102, 16
    %vm287 = vcmp.lt.s32.totalorder %v103, 16
    %vm288 = vcmp.lt.s32.totalorder %v104, 16
    %vm289 = vcmp.lt.s32.totalorder %v105, 16
    %vm290 = vcmp.lt.s32.totalorder %v106, 16
    %vm291 = vmand %vm259, %vm275
    %vm292 = vmand %vm260, %vm276
    %vm293 = vmand %vm261, %vm277
    %vm294 = vmand %vm262, %vm278
    %vm295 = vmand %vm263, %vm279
    %vm296 = vmand %vm264, %vm280
    %vm297 = vmand %vm265, %vm281
    %vm298 = vmand %vm266, %vm282
    %vm299 = vmand %vm267, %vm283
    %vm300 = vmand %vm268, %vm284
    %vm301 = vmand %vm269, %vm285
    %vm302 = vmand %vm270, %vm286
    %vm303 = vmand %vm271, %vm287
    %vm304 = vmand %vm272, %vm288
    %vm305 = vmand %vm273, %vm289
    %vm306 = vmand %vm274, %vm290
    %v307 = vsel %vm291, 1, 0
    %v308 = vsel %vm292, 1, 0
    %v309 = vsel %vm293, 1, 0
    %v310 = vsel %vm294, 1, 0
    %v311 = vsel %vm295, 1, 0
    %v312 = vsel %vm296, 1, 0
    %v313 = vsel %vm297, 1, 0
    %v314 = vsel %vm298, 1, 0
    %v315 = vsel %vm299, 1, 0
    %v316 = vsel %vm300, 1, 0
    %v317 = vsel %vm301, 1, 0
    %v318 = vsel %vm302, 1, 0
    %v319 = vsel %vm303, 1, 0
    %v320 = vsel %vm304, 1, 0
    %v321 = vsel %vm305, 1, 0
    %v322 = vsel %vm306, 1, 0
    %v323 = vcvt.s32.f32 %v307
    %v324 = vcvt.s32.f32 %v308
    %v325 = vcvt.s32.f32 %v309
    %v326 = vcvt.s32.f32 %v310
    %v327 = vcvt.s32.f32 %v311
    %v328 = vcvt.s32.f32 %v312
    %v329 = vcvt.s32.f32 %v313
    %v330 = vcvt.s32.f32 %v314
    %v331 = vcvt.s32.f32 %v315
    %v332 = vcvt.s32.f32 %v316
    %v333 = vcvt.s32.f32 %v317
    %v334 = vcvt.s32.f32 %v318
    %v335 = vcvt.s32.f32 %v319
    %v336 = vcvt.s32.f32 %v320
    %v337 = vcvt.s32.f32 %v321
    %v338 = vcvt.s32.f32 %v322
    %vm339 = vcmask 7168
    %v340 = vsel %vm339, %v323, 0.0
    %v341 = vsel %vm339, %v324, 0.0
    %v342 = vadd.f32 %v340, %v341
    %v343 = vsel %vm339, %v325, 0.0
    %v344 = vadd.f32 %v342, %v343
    %v345 = vsel %vm339, %v326, 0.0
    %v346 = vadd.f32 %v344, %v345
    %v347 = vsel %vm339, %v327, 0.0
    %v348 = vadd.f32 %v346, %v347
    %v349 = vsel %vm339, %v328, 0.0
    %v350 = vadd.f32 %v348, %v349
    %v351 = vsel %vm339, %v329, 0.0
    %v352 = vadd.f32 %v350, %v351
    %v353 = vsel %vm339, %v330, 0.0
    %v354 = vadd.f32 %v352, %v353
    %v355 = vsel %vm339, %v331, 0.0
    %v356 = vadd.f32 %v354, %v355
    %v357 = vsel %vm339, %v332, 0.0
    %v358 = vadd.f32 %v356, %v357
    %v359 = vsel %vm339, %v333, 0.0
    %v360 = vadd.f32 %v358, %v359
    %v361 = vsel %vm339, %v334, 0.0
    %v362 = vadd.f32 %v360, %v361
    %v363 = vsel %vm339, %v335, 0.0
    %v364 = vadd.f32 %v362, %v363
    %v365 = vsel %vm339, %v336, 0.0
    %v366 = vadd.f32 %v364, %v365
    %v367 = vsel %vm339, %v337, 0.0
    %v368 = vadd.f32 %v366, %v367
    %v369 = vsel %vm339, %v338, 0.0
    %v370 = vadd.f32 %v368, %v369
    %v371 = vrot.slane %v370, 4
    %v372 = vadd.f32 %v370, %v371
    %v373 = vrot.slane %v372, 2
    %v374 = vadd.f32 %v372, %v373
    %v375 = vrot.slane %v374, 1
    %v376 = vadd.f32 %v374, %v375
    %v377 = vld [vmem:[#allocation2] sm:$0xff]
    %v378 = vadd.f32 %v377, %v258
    %379 = vst [vmem:[#allocation2] sm:$0xff] %v378
    %v380 = vld [vmem:[#allocation4] sm:$0xff]
    %382 = vset.pattern.permute.xlu0 0
    %383 = vperm.xlu0 %382, %v376
    %v384 = vpop.permute.xlu0 %383
    %v386 = vadd.f32 %v380, %v384
    %387 = vst [vmem:[#allocation4] sm:$0xff] %v386
    // Predicated region
    $region14: #{tpu_custom_call.1} parent=1 // pred_check
      _
    $region15: #{tpu_custom_call.1} parent=1 // pred_check_branch
      %389 = sbr.rel (0) target = $region17
    $region16: #{tpu_custom_call.1} parent=1 // pred_region
      %s391 = ssub.s32 128, 128
      %392 = vsyncadd [#allocation3], %s391
      %s394 = sshll.u32 [#allocation2], 4
      %s395 = int_to_ptr.vmem [resolvable:$true] %s394
      %397 = dma.vmem_to_hbm [thread:$0]  %s395, 128, %s2, [#allocation3]
    $region17: #{tpu_custom_call.1} parent=1 // pred_fallthru
      _
    // Predicated region
    $region18: #{tpu_custom_call.1} parent=1 // pred_check
      _
    $region19: #{tpu_custom_call.1} parent=1 // pred_check_branch
      %399 = sbr.rel (0) target = $region21
    $region20: #{tpu_custom_call.1} parent=1 // pred_region
      %s401 = ssub.s32 128, 128
      %402 = vsyncadd [#allocation5], %s401
      %s404 = sshll.u32 [#allocation4], 4
      %s405 = int_to_ptr.vmem [resolvable:$true] %s404
      %407 = dma.vmem_to_hbm [thread:$0]  %s405, 128, %s3, [#allocation5]
    $region21: #{tpu_custom_call.1} parent=1 // pred_fallthru
      _
    // Predicated region
    $region22: #{tpu_custom_call.1} parent=1 // pred_check
      _
    $region23: #{tpu_custom_call.1} parent=1 // pred_check_branch
      %409 = sbr.rel (0) target = $region25
    $region24: #{tpu_custom_call.1} parent=1 // pred_region
      %410 = dma.done [#allocation3], 128
    $region25: #{tpu_custom_call.1} parent=1 // pred_fallthru
      _
    // Predicated region
    $region26: #{tpu_custom_call.1} parent=1 // pred_check
      _
    $region27: #{tpu_custom_call.1} parent=1 // pred_check_branch
      %412 = sbr.rel (0) target = $region29
    $region28: #{tpu_custom_call.1} parent=1 // pred_region
      %413 = dma.done [#allocation5], 128
    $region29: #{tpu_custom_call.1} parent=1 // pred_fallthru
      _
    %414 = vsyncpa [#allocation3], 1
    %415 = vsyncpa [#allocation5], 1

</llo_original>
